<compile_context>
chip_gen: v7x
topology: tpu7x:2x2x1
jax: 0.10.0
libtpu: 0.0.40
codegen_flags: <defaults>
</compile_context>

<pallas_src>
import numpy as np
import jax
import jax.numpy as jnp
from jax.experimental import pallas as pl
from jax.experimental.pallas import tpu as pltpu

_NEG_INF = np.float32(-1e30)
_SLOPE = 0.01                      # F.leaky_relu default negative slope


def _round_up(x, m):
    return ((x + m - 1) // m) * m


# ----------------------------------------------------------------------------
# Wrapper-side packing
# ----------------------------------------------------------------------------
def pack_weight_slab(layer_params, wfc, bfc):
    """One bf16 weight slab; row offsets are static Python ints baked into the kernel.

    Per layer:
      wn_ext = [wn | wn@adst | wn@asrc]   rows [wn_r0, wn_r0+din)
      wo      (last layer: wo @ wfc)      rows [wo_r0, wo_r0+dh)
    Final 8-row block holds bfc in row 0.
    """
    n_layers = len(layer_params)
    max_cols = max(
        [wn.shape[1] + 2 for (wn, we, asrc, adst, aedge, wo) in layer_params]
        + [wo.shape[1] for (wn, we, asrc, adst, aedge, wo) in layer_params[:-1]]
        + [wfc.shape[1]])
    slab_w = _round_up(max(max_cols, 128), 128)

    blocks, meta = [], []
    r = 0
    for li, (wn, we, asrc, adst, aedge, wo) in enumerate(layer_params):
        din, dh = wn.shape
        wn_ext = jnp.concatenate([wn, wn @ adst, wn @ asrc], axis=1)        # [din, dh+2]
        wo_eff = (wo @ wfc) if li == n_layers - 1 else wo                   # fold final fc
        dout = wo_eff.shape[1]
        wn_rows = _round_up(din, 8)
        wo_rows = _round_up(dh, 8)
        blocks.append(jnp.zeros((wn_rows, slab_w), jnp.float32)
                      .at[:din, :dh + 2].set(wn_ext))
        blocks.append(jnp.zeros((wo_rows, slab_w), jnp.float32)
                      .at[:dh, :dout].set(wo_eff))
        meta.append(dict(wn_r0=r, din=din, dh=dh, wo_r0=r + wn_rows, dout=dout))
        r += wn_rows + wo_rows
    bias_r0 = r
    blocks.append(jnp.zeros((8, slab_w), jnp.float32).at[0, :bfc.shape[1]].set(bfc[0]))
    slab = jnp.concatenate(blocks, axis=0).astype(jnp.bfloat16)
    return slab, meta, bias_r0


def edge_attention_scores(edge_feats, layer_params, n_nodes):
    """Edge pathway (node-independent) folded wrapper-side in f32.

    edge_feats: [G, N*N, De] flat edges, row m = dst*N + src.
    Returns the per-layer additive attention scores s_edge: [G, L, N, N] (dst, src).
    """
    g = edge_feats.shape[0]
    n_layers = len(layer_params)
    xe = edge_feats
    scores = []
    for li, (wn, we, asrc, adst, aedge, wo) in enumerate(layer_params):
        ze = jnp.einsum('gmk,kh->gmh', xe, we)                      # [G, NN, Deh]
        s = jnp.einsum('gmh,hq->gmq', ze, aedge)[..., 0]            # [G, NN]
        scores.append(s.reshape(g, n_nodes, n_nodes))
        if li < n_layers - 1:
            xe = jnp.where(ze > 0, ze, _SLOPE * ze)                 # leaky_relu between layers
    return jnp.stack(scores, axis=1)                                # [G, L, N, N]


# ----------------------------------------------------------------------------
# Fused node-path kernel (all GAT layers + readout + classifier, one grid step
# per graph batch)
# ----------------------------------------------------------------------------
def _make_gat_kernel(n_layers, n_nodes, n_classes, meta, bias_r0):
    N = n_nodes

    def kernel(xn_ref, fs_ref, w_ref, out_ref):
        # xn_ref : [1, N, Din]         bf16   node features of this graph batch
        # fs_ref : [1, (L+2)*N, N]     f32    rows [l*N:(l+1)*N] = s_edge layer l,
        #                                     rows [L*N:(L+1)*N] = additive mask bias,
        #                                     rows [(L+1)*N:]    = membership (rows >= B zero)
        # w_ref  : [R, 128]            bf16   packed weight slab (same block every step)
        # out_ref: [1, N, C]           f32    logits (rows >= B sliced off by the wrapper)
        xn = xn_ref[0]                                              # [N, Din] bf16
        fs = fs_ref[0]                                              # [(L+2)*N, N] f32
        mask_bias = fs[n_layers * N:(n_layers + 1) * N, :]          # [N, N]
        ones_row = jnp.ones((1, N), jnp.float32)

        h = None
        for li in range(n_layers):
            m = meta[li]
            dh = m["dh"]
            # ---- fused node projection + attention projections (one MXU matmul) ----
            wn_ext = w_ref[m["wn_r0"]:m["wn_r0"] + m["din"], :]     # [Din, 128] bf16
            z_ext = jnp.dot(xn, wn_ext, preferred_element_type=jnp.float32)   # [N, 128] f32
            z = z_ext[:, :dh]                                       # [N, dh]
            s_dst = z_ext[:, dh:dh + 1]                             # [N, 1]  (dst term)
            s_src_col = z_ext[:, dh + 1:dh + 2]                     # [N, 1]  (src term)
            # broadcast the src column across dst rows: [N,1]*[1,N] then a square
            # [N, N] transpose (XLU; proven lowering), instead of a [N,1] transpose.
            s_src = (s_src_col * ones_row).T                        # [N, N]

            # ---- attention logits on the dense [dst, src] tile ----
            logits = s_dst + s_src + fs[li * N:(li + 1) * N, :]
            logits = jnp.where(logits > 0, logits, _SLOPE * logits)          # leaky_relu
            masked = logits + mask_bias                              # -1e30 on non-edges

            # ---- per-destination softmax over src (lane axis) ----
            mx = jnp.max(masked, axis=-1, keepdims=True)
            e = jnp.exp(masked - mx)                                 # non-edges underflow to 0
            denom = jnp.sum(e, axis=-1, keepdims=True)
            # NOTE: a fully isolated node would give a uniform row here (no NaN);
            # the reference yields NaN in that case.  Test graphs have self loops.
            alpha = e * pl.reciprocal(denom, approx=True)            # EUP, ~free

            # ---- weighted aggregation ----
            h = jnp.dot(alpha.astype(jnp.bfloat16), z.astype(jnp.bfloat16),
                        preferred_element_type=jnp.float32)          # [N, dh]

            if li < n_layers - 1:
                wo = w_ref[m["wo_r0"]:m["wo_r0"] + dh, :]            # [dh, 128]
                xn_new = jnp.dot(h.astype(jnp.bfloat16), wo,
                                 preferred_element_type=jnp.float32)[:, :m["dout"]]
                xn = jnp.where(xn_new > 0, xn_new, _SLOPE * xn_new).astype(jnp.bfloat16)

        # ---- readout (dgl.sum_nodes via padded membership) + folded (wo_last@wfc) + bias
        mlast = meta[n_layers - 1]
        member = fs[(n_layers + 1) * N:(n_layers + 2) * N, :].astype(jnp.bfloat16)  # [N, N]
        pooled = jnp.dot(member, h.astype(jnp.bfloat16),
                         preferred_element_type=jnp.float32)         # [N, dh] (rows>=B zero)
        wfold = w_ref[mlast["wo_r0"]:mlast["wo_r0"] + mlast["dh"], :]
        out = jnp.dot(pooled.astype(jnp.bfloat16), wfold,
                      preferred_element_type=jnp.float32)            # [N, 128]
        out = out + w_ref[bias_r0:bias_r0 + 1, :].astype(jnp.float32)
        out_ref[0] = out[:, :n_classes]

    return kernel


# ----------------------------------------------------------------------------
# Forward wrapper
# ----------------------------------------------------------------------------
def model_forward(node_feats, edge_feats, adj, member, layer_params, wfc, bfc):
    """node_feats [G,N,Dn], edge_feats [G,N*N,De], adj [G,N,N] (dst,src),
    member [G,B,N] -> logits [G,B,C].  One pallas_call, grid over graph batches."""
    g_batches, n_nodes, node_dim = node_feats.shape
    b_graphs = member.shape[1]
    n_classes = wfc.shape[1]
    n_layers = len(layer_params)

    slab, meta, bias_r0 = pack_weight_slab(layer_params, wfc, bfc)
    slab_r, slab_w = slab.shape

    sedge = edge_attention_scores(edge_feats, layer_params, n_nodes)          # [G,L,N,N] f32
    mask_bias = jnp.where(adj > 0, 0.0, _NEG_INF).astype(jnp.float32)[:, None]
    member_pad = (jnp.zeros((g_batches, 1, n_nodes, n_nodes), jnp.float32)
                  .at[:, 0, :b_graphs, :].set(member.astype(jnp.float32)))
    fslab = jnp.concatenate([sedge, mask_bias, member_pad], axis=1)
    fslab = fslab.reshape(g_batches, (n_layers + 2) * n_nodes, n_nodes).astype(jnp.float32)

    xn = node_feats.astype(jnp.bfloat16)

    # rough advisory cost estimate for the custom call
    flops = 0
    for li, (wn, we, asrc, adst, aedge, wo) in enumerate(layer_params):
        din, dh = wn.shape
        flops += 2 * n_nodes * din * (dh + 2) + 2 * n_nodes * n_nodes * dh
        flops += 2 * n_nodes * dh * (wo.shape[1] if li < n_layers - 1 else n_classes)
    flops += 2 * n_nodes * n_nodes * meta[-1]["dh"]
    flops *= g_batches
    transc = g_batches * n_layers * (n_nodes * n_nodes + n_nodes)
    bytes_accessed = (xn.size * 2 + fslab.size * 4 + slab.size * 2
                      + g_batches * n_nodes * n_classes * 4)

    kern = _make_gat_kernel(n_layers, n_nodes, n_classes, meta, bias_r0)
    out_pad = pl.pallas_call(
        kern,
        out_shape=jax.ShapeDtypeStruct((g_batches, n_nodes, n_classes), jnp.float32),
        grid=(g_batches,),
        in_specs=[
            pl.BlockSpec((1, n_nodes, node_dim), lambda g: (g, 0, 0)),
            pl.BlockSpec((1, (n_layers + 2) * n_nodes, n_nodes), lambda g: (g, 0, 0)),
            pl.BlockSpec((slab_r, slab_w), lambda g: (0, 0)),        # weights: resident
        ],
        out_specs=pl.BlockSpec((1, n_nodes, n_classes), lambda g: (g, 0, 0)),
        compiler_params=pltpu.CompilerParams(
            dimension_semantics=("parallel",)),
        cost_estimate=pl.CostEstimate(flops=int(flops),
                                      transcendentals=int(transc),
                                      bytes_accessed=int(bytes_accessed)),
    )(xn, fslab, slab)
    return out_pad[:, :b_graphs, :]


# ----------------------------------------------------------------------------
# Pure-JAX f32 reference (single graph batch) for validation
# ----------------------------------------------------------------------------
def reference_forward(node_feats, edge_feats, adj, layer_params, wfc, bfc, member):
    n = node_feats.shape[0]
    xn, xe = node_feats, edge_feats
    n_layers = len(layer_params)
    for li, (wn, we, asrc, adst, aedge, wo) in enumerate(layer_params):
        z = xn @ wn
        ze = xe @ we
        s_src = (z @ asrc)[:, 0]
        s_dst = (z @ adst)[:, 0]
        s_edge = (ze @ aedge)[:, 0].reshape(n, n)            # [dst, src]
        logits = s_dst[:, None] + s_src[None, :] + s_edge
        logits = jnp.where(logits > 0, logits, 0.01 * logits)
        logits = jnp.where(adj > 0, logits, -jnp.inf)
        m = jnp.max(logits, axis=1, keepdims=True)
        e = jnp.exp(logits - m) * adj
        alpha = e / jnp.sum(e, axis=1, keepdims=True)
        h = alpha @ z
        xn_new = h @ wo
        xe_new = ze
        if li < n_layers - 1:
            xn_new = jax.nn.leaky_relu(xn_new, 0.01)
            xe_new = jax.nn.leaky_relu(xe_new, 0.01)
        xn, xe = xn_new, xe_new
    return (member @ xn) @ wfc + bfc


# ----------------------------------------------------------------------------
# Main
# ----------------------------------------------------------------------------
if __name__ == "__main__":
    G = 8               # graph batches processed per pallas_call (grid axis)
    N = 16              # nodes per batched graph
    B = 2               # graphs in each batch, 8 nodes each
    NN = N * N
    D_TYPE, D_LABEL = 6, 10
    NODE_DIM = D_TYPE + D_LABEL      # node_features_use = 'all'
    EDGE_DIM = 8                     # edge_features_use = 'label'
    N_CLASSES = 4
    LAYER_CFG = [
        dict(node_in=NODE_DIM, edge_in=EDGE_DIM, dh=16, deh=8, dout=16),
        dict(node_in=16,       edge_in=8,        dh=16, deh=8, dout=16),
    ]

    # ---- deterministic graph structure (shared topology): per-graph ring + self loops
    adj_np = np.zeros((N, N), dtype=np.float32)   # adj[dst, src]
    per_graph = N // B
    for gph in range(B):
        base = gph * per_graph
        for j in range(per_graph):
            adj_np[base + j, base + j] = 1.0
            adj_np[base + (j + 1) % per_graph, base + j] = 1.0
    member_np = np.zeros((B, N), dtype=np.float32)
    for gph in range(B):
        member_np[gph, gph * per_graph:(gph + 1) * per_graph] = 1.0

    adj = jnp.broadcast_to(jnp.asarray(adj_np), (G, N, N))
    member = jnp.broadcast_to(jnp.asarray(member_np), (G, B, N))
    mask_flat = jnp.asarray(adj_np).reshape(NN, 1)

    # ---- deterministic inputs / parameters
    key = jax.random.PRNGKey(0)
    keys = jax.random.split(key, 32)
    node_types = jax.random.normal(keys[0], (G, N, D_TYPE), jnp.float32)
    node_labels = jax.random.normal(keys[1], (G, N, D_LABEL), jnp.float32)
    node_feats = jnp.concatenate([node_types, node_labels], axis=-1)          # [G, N, 16]
    edge_feats = jax.random.normal(keys[2], (G, NN, EDGE_DIM), jnp.float32) * mask_flat[None]

    layer_params = []
    kidx = 3
    for cfg in LAYER_CFG:
        wn = 0.2 * jax.random.normal(keys[kidx + 0], (cfg["node_in"], cfg["dh"]), jnp.float32)
        we = 0.2 * jax.random.normal(keys[kidx + 1], (cfg["edge_in"], cfg["deh"]), jnp.float32)
        asrc = 0.2 * jax.random.normal(keys[kidx + 2], (cfg["dh"], 1), jnp.float32)
        adst = 0.2 * jax.random.normal(keys[kidx + 3], (cfg["dh"], 1), jnp.float32)
        aedge = 0.2 * jax.random.normal(keys[kidx + 4], (cfg["deh"], 1), jnp.float32)
        wo = 0.2 * jax.random.normal(keys[kidx + 5], (cfg["dh"], cfg["dout"]), jnp.float32)
        layer_params.append((wn, we, asrc, adst, aedge, wo))
        kidx += 6
    wfc = 0.2 * jax.random.normal(keys[kidx + 0], (LAYER_CFG[-1]["dout"], N_CLASSES), jnp.float32)
    bfc = 0.2 * jax.random.normal(keys[kidx + 1], (1, N_CLASSES), jnp.float32)

    # ---- run fused Pallas model (one jit: tiny edge-path fusion + one pallas_call)
    fwd = jax.jit(model_forward)
    out = jax.block_until_ready(fwd(node_feats, edge_feats, adj, member,
                                    layer_params, wfc, bfc))

    # ---- validate against pure-JAX f32 reference (bf16 MXU operands => looser tol)
    ref = jnp.stack([reference_forward(node_feats[g], edge_feats[g], adj[g],
                                       layer_params, wfc, bfc, member[g])
                     for g in range(G)])
    ref = jax.block_until_ready(ref)
    np.testing.assert_allclose(np.asarray(out), np.asarray(ref), rtol=3e-2, atol=3e-2)

    print("KERNEL_OK")
</pallas_src>

<mosaic_0001>
module attributes {stable_mosaic.version = 11 : i64} {
  func.func @kernel(%arg0: i32, %arg1: memref<1x16x16xbf16, #tpu.memory_space<vmem>>, %arg2: memref<1x64x16xf32, #tpu.memory_space<vmem>>, %arg3: memref<72x128xbf16, #tpu.memory_space<vmem>>, %arg4: memref<1x16x4xf32, #tpu.memory_space<vmem>>) attributes {dimension_semantics = [#tpu.dimension_semantics<parallel>], iteration_bounds = array<i64: 8>, scalar_prefetch = 0 : i64, scratch_operands = 0 : i64, tpu.core_type = #tpu.core_type<tc>, window_params = [{transform_indices = @transform_0, window_bounds = array<i64: 1, 16, 16>}, {transform_indices = @transform_1, window_bounds = array<i64: 1, 64, 16>}, {pipeline_mode = #tpu.pipeline_mode<synchronous>, transform_indices = @transform_2, window_bounds = array<i64: 72, 128>}, {transform_indices = @transform_3, window_bounds = array<i64: 1, 16, 4>}]} {
    %c0 = arith.constant 0 : index
    %c0_0 = arith.constant 0 : index
    %c0_1 = arith.constant 0 : index
    %0 = vector.load %arg1[%c0, %c0_0, %c0_1] : memref<1x16x16xbf16, #tpu.memory_space<vmem>>, vector<1x16x16xbf16>
    %1 = vector.shape_cast %0 : vector<1x16x16xbf16> to vector<16x16xbf16>
    %c0_2 = arith.constant 0 : index
    %c0_3 = arith.constant 0 : index
    %c0_4 = arith.constant 0 : index
    %2 = vector.load %arg2[%c0_2, %c0_3, %c0_4] : memref<1x64x16xf32, #tpu.memory_space<vmem>>, vector<1x64x16xf32>
    %3 = vector.shape_cast %2 : vector<1x64x16xf32> to vector<64x16xf32>
    %4 = vector.extract_strided_slice %3 {offsets = [32, 0], sizes = [16, 16], strides = [1, 1]} : vector<64x16xf32> to vector<16x16xf32>
    %cst = arith.constant 1.000000e+00 : f32
    %5 = vector.broadcast %cst : f32 to vector<1x16xf32>
    %c0_5 = arith.constant 0 : index
    %c0_6 = arith.constant 0 : index
    %6 = vector.load %arg3[%c0_5, %c0_6] : memref<72x128xbf16, #tpu.memory_space<vmem>>, vector<16x128xbf16>
    %cst_7 = arith.constant dense<0.000000e+00> : vector<16x128xf32>
    %7 = tpu.matmul %1, %6, %cst_7 {dimension_numbers = #tpu.dot_dimension_numbers<[1], [0], [0], [1], [0, 0, 1, 1], [], []>} : vector<16x16xbf16>, vector<16x128xbf16>, vector<16x128xf32> -> vector<16x128xf32>
    %8 = vector.extract_strided_slice %7 {offsets = [0, 0], sizes = [16, 16], strides = [1, 1]} : vector<16x128xf32> to vector<16x16xf32>
    %9 = vector.extract_strided_slice %7 {offsets = [0, 16], sizes = [16, 1], strides = [1, 1]} : vector<16x128xf32> to vector<16x1xf32>
    %10 = vector.extract_strided_slice %7 {offsets = [0, 17], sizes = [16, 1], strides = [1, 1]} : vector<16x128xf32> to vector<16x1xf32>
    %11 = vector.broadcast %10 : vector<16x1xf32> to vector<16x16xf32>
    %12 = vector.broadcast %5 : vector<1x16xf32> to vector<16x16xf32>
    %13 = arith.mulf %11, %12 : vector<16x16xf32>
    %14 = tpu.transpose %13, [1, 0] : vector<16x16xf32> -> vector<16x16xf32>
    %15 = vector.broadcast %9 : vector<16x1xf32> to vector<16x16xf32>
    %16 = arith.addf %15, %14 : vector<16x16xf32>
    %17 = vector.extract_strided_slice %3 {offsets = [0, 0], sizes = [16, 16], strides = [1, 1]} : vector<64x16xf32> to vector<16x16xf32>
    %18 = arith.addf %16, %17 : vector<16x16xf32>
    %cst_8 = arith.constant 0.000000e+00 : f32
    %19 = vector.broadcast %cst_8 : f32 to vector<16x16xf32>
    %20 = arith.cmpf ogt, %18, %19 : vector<16x16xf32>
    %cst_9 = arith.constant 0.00999999977 : f32
    %21 = vector.broadcast %cst_9 : f32 to vector<16x16xf32>
    %22 = arith.mulf %21, %18 : vector<16x16xf32>
    %23 = arith.select %20, %18, %22 : vector<16x16xi1>, vector<16x16xf32>
    %24 = arith.addf %23, %4 : vector<16x16xf32>
    %cst_10 = arith.constant dense<0xFF800000> : vector<16xf32>
    %25 = vector.multi_reduction <maximumf>, %24, %cst_10 [1] : vector<16x16xf32> to vector<16xf32>
    %26 = vector.shape_cast %25 : vector<16xf32> to vector<16x1xf32>
    %27 = vector.broadcast %26 : vector<16x1xf32> to vector<16x16xf32>
    %28 = arith.subf %24, %27 : vector<16x16xf32>
    %29 = math.exp %28 : vector<16x16xf32>
    %cst_11 = arith.constant dense<0.000000e+00> : vector<16xf32>
    %30 = vector.multi_reduction <add>, %29, %cst_11 [1] : vector<16x16xf32> to vector<16xf32>
    %31 = vector.shape_cast %30 : vector<16xf32> to vector<16x1xf32>
    %32 = tpu.reciprocal %31 {approx = true} : vector<16x1xf32> -> vector<16x1xf32>
    %33 = vector.broadcast %32 : vector<16x1xf32> to vector<16x16xf32>
    %34 = arith.mulf %29, %33 : vector<16x16xf32>
    %35 = arith.truncf %34 : vector<16x16xf32> to vector<16x16xbf16>
    %36 = arith.truncf %8 : vector<16x16xf32> to vector<16x16xbf16>
    %cst_12 = arith.constant dense<0.000000e+00> : vector<16x16xf32>
    %37 = tpu.matmul %35, %36, %cst_12 {dimension_numbers = #tpu.dot_dimension_numbers<[1], [0], [0], [1], [0, 0, 1, 1], [], []>} : vector<16x16xbf16>, vector<16x16xbf16>, vector<16x16xf32> -> vector<16x16xf32>
    %c16 = arith.constant 16 : index
    %c0_13 = arith.constant 0 : index
    %38 = vector.load %arg3[%c16, %c0_13] : memref<72x128xbf16, #tpu.memory_space<vmem>>, vector<16x128xbf16>
    %39 = arith.truncf %37 : vector<16x16xf32> to vector<16x16xbf16>
    %cst_14 = arith.constant dense<0.000000e+00> : vector<16x128xf32>
    %40 = tpu.matmul %39, %38, %cst_14 {dimension_numbers = #tpu.dot_dimension_numbers<[1], [0], [0], [1], [0, 0, 1, 1], [], []>} : vector<16x16xbf16>, vector<16x128xbf16>, vector<16x128xf32> -> vector<16x128xf32>
    %41 = vector.extract_strided_slice %40 {offsets = [0, 0], sizes = [16, 16], strides = [1, 1]} : vector<16x128xf32> to vector<16x16xf32>
    %cst_15 = arith.constant 0.000000e+00 : f32
    %42 = vector.broadcast %cst_15 : f32 to vector<16x16xf32>
    %43 = arith.cmpf ogt, %41, %42 : vector<16x16xf32>
    %cst_16 = arith.constant 0.00999999977 : f32
    %44 = vector.broadcast %cst_16 : f32 to vector<16x16xf32>
    %45 = arith.mulf %44, %41 : vector<16x16xf32>
    %46 = arith.select %43, %41, %45 : vector<16x16xi1>, vector<16x16xf32>
    %47 = arith.truncf %46 : vector<16x16xf32> to vector<16x16xbf16>
    %c32 = arith.constant 32 : index
    %c0_17 = arith.constant 0 : index
    %48 = vector.load %arg3[%c32, %c0_17] : memref<72x128xbf16, #tpu.memory_space<vmem>>, vector<16x128xbf16>
    %cst_18 = arith.constant dense<0.000000e+00> : vector<16x128xf32>
    %49 = tpu.matmul %47, %48, %cst_18 {dimension_numbers = #tpu.dot_dimension_numbers<[1], [0], [0], [1], [0, 0, 1, 1], [], []>} : vector<16x16xbf16>, vector<16x128xbf16>, vector<16x128xf32> -> vector<16x128xf32>
    %50 = vector.extract_strided_slice %49 {offsets = [0, 0], sizes = [16, 16], strides = [1, 1]} : vector<16x128xf32> to vector<16x16xf32>
    %51 = vector.extract_strided_slice %49 {offsets = [0, 16], sizes = [16, 1], strides = [1, 1]} : vector<16x128xf32> to vector<16x1xf32>
    %52 = vector.extract_strided_slice %49 {offsets = [0, 17], sizes = [16, 1], strides = [1, 1]} : vector<16x128xf32> to vector<16x1xf32>
    %53 = vector.broadcast %52 : vector<16x1xf32> to vector<16x16xf32>
    %54 = vector.broadcast %5 : vector<1x16xf32> to vector<16x16xf32>
    %55 = arith.mulf %53, %54 : vector<16x16xf32>
    %56 = tpu.transpose %55, [1, 0] : vector<16x16xf32> -> vector<16x16xf32>
    %57 = vector.broadcast %51 : vector<16x1xf32> to vector<16x16xf32>
    %58 = arith.addf %57, %56 : vector<16x16xf32>
    %59 = vector.extract_strided_slice %3 {offsets = [16, 0], sizes = [16, 16], strides = [1, 1]} : vector<64x16xf32> to vector<16x16xf32>
    %60 = arith.addf %58, %59 : vector<16x16xf32>
    %cst_19 = arith.constant 0.000000e+00 : f32
    %61 = vector.broadcast %cst_19 : f32 to vector<16x16xf32>
    %62 = arith.cmpf ogt, %60, %61 : vector<16x16xf32>
    %cst_20 = arith.constant 0.00999999977 : f32
    %63 = vector.broadcast %cst_20 : f32 to vector<16x16xf32>
    %64 = arith.mulf %63, %60 : vector<16x16xf32>
    %65 = arith.select %62, %60, %64 : vector<16x16xi1>, vector<16x16xf32>
    %66 = arith.addf %65, %4 : vector<16x16xf32>
    %cst_21 = arith.constant dense<0xFF800000> : vector<16xf32>
    %67 = vector.multi_reduction <maximumf>, %66, %cst_21 [1] : vector<16x16xf32> to vector<16xf32>
    %68 = vector.shape_cast %67 : vector<16xf32> to vector<16x1xf32>
    %69 = vector.broadcast %68 : vector<16x1xf32> to vector<16x16xf32>
    %70 = arith.subf %66, %69 : vector<16x16xf32>
    %71 = math.exp %70 : vector<16x16xf32>
    %cst_22 = arith.constant dense<0.000000e+00> : vector<16xf32>
    %72 = vector.multi_reduction <add>, %71, %cst_22 [1] : vector<16x16xf32> to vector<16xf32>
    %73 = vector.shape_cast %72 : vector<16xf32> to vector<16x1xf32>
    %74 = tpu.reciprocal %73 {approx = true} : vector<16x1xf32> -> vector<16x1xf32>
    %75 = vector.broadcast %74 : vector<16x1xf32> to vector<16x16xf32>
    %76 = arith.mulf %71, %75 : vector<16x16xf32>
    %77 = arith.truncf %76 : vector<16x16xf32> to vector<16x16xbf16>
    %78 = arith.truncf %50 : vector<16x16xf32> to vector<16x16xbf16>
    %cst_23 = arith.constant dense<0.000000e+00> : vector<16x16xf32>
    %79 = tpu.matmul %77, %78, %cst_23 {dimension_numbers = #tpu.dot_dimension_numbers<[1], [0], [0], [1], [0, 0, 1, 1], [], []>} : vector<16x16xbf16>, vector<16x16xbf16>, vector<16x16xf32> -> vector<16x16xf32>
    %80 = vector.extract_strided_slice %3 {offsets = [48, 0], sizes = [16, 16], strides = [1, 1]} : vector<64x16xf32> to vector<16x16xf32>
    %81 = arith.truncf %80 : vector<16x16xf32> to vector<16x16xbf16>
    %82 = arith.truncf %79 : vector<16x16xf32> to vector<16x16xbf16>
    %cst_24 = arith.constant dense<0.000000e+00> : vector<16x16xf32>
    %83 = tpu.matmul %81, %82, %cst_24 {dimension_numbers = #tpu.dot_dimension_numbers<[1], [0], [0], [1], [0, 0, 1, 1], [], []>} : vector<16x16xbf16>, vector<16x16xbf16>, vector<16x16xf32> -> vector<16x16xf32>
    %c48 = arith.constant 48 : index
    %c0_25 = arith.constant 0 : index
    %84 = vector.load %arg3[%c48, %c0_25] : memref<72x128xbf16, #tpu.memory_space<vmem>>, vector<16x128xbf16>
    %85 = arith.truncf %83 : vector<16x16xf32> to vector<16x16xbf16>
    %cst_26 = arith.constant dense<0.000000e+00> : vector<16x128xf32>
    %86 = tpu.matmul %85, %84, %cst_26 {dimension_numbers = #tpu.dot_dimension_numbers<[1], [0], [0], [1], [0, 0, 1, 1], [], []>} : vector<16x16xbf16>, vector<16x128xbf16>, vector<16x128xf32> -> vector<16x128xf32>
    %c64 = arith.constant 64 : index
    %c0_27 = arith.constant 0 : index
    %87 = vector.load %arg3[%c64, %c0_27] : memref<72x128xbf16, #tpu.memory_space<vmem>>, vector<1x128xbf16>
    %88 = arith.extf %87 : vector<1x128xbf16> to vector<1x128xf32>
    %89 = vector.broadcast %88 : vector<1x128xf32> to vector<16x128xf32>
    %90 = arith.addf %86, %89 : vector<16x128xf32>
    %91 = vector.extract_strided_slice %90 {offsets = [0, 0], sizes = [16, 4], strides = [1, 1]} : vector<16x128xf32> to vector<16x4xf32>
    %c0_28 = arith.constant 0 : index
    %c0_29 = arith.constant 0 : index
    %c0_30 = arith.constant 0 : index
    %92 = vector.load %arg4[%c0_28, %c0_29, %c0_30] : memref<1x16x4xf32, #tpu.memory_space<vmem>>, vector<1x16x4xf32>
    %93 = vector.shape_cast %92 : vector<1x16x4xf32> to vector<16x4xf32>
    %94 = vector.shape_cast %91 : vector<16x4xf32> to vector<1x16x4xf32>
    tpu.vector_store %arg4[%c0_28, %c0_29, %c0_30], %94 {strides = array<i32>} : memref<1x16x4xf32, #tpu.memory_space<vmem>>, vector<1x16x4xf32>,
    return
  }
  func.func @transform_0(%arg0: i32) -> (i32, i32, i32) {
    %c0_i32 = arith.constant 0 : i32
    %c0_i32_0 = arith.constant 0 : i32
    %c0_i32_1 = arith.constant 0 : i32
    return %arg0, %c0_i32, %c0_i32_0 : i32, i32, i32
  }
  func.func @transform_1(%arg0: i32) -> (i32, i32, i32) {
    %c0_i32 = arith.constant 0 : i32
    %c0_i32_0 = arith.constant 0 : i32
    %c0_i32_1 = arith.constant 0 : i32
    return %arg0, %c0_i32, %c0_i32_0 : i32, i32, i32
  }
  func.func @transform_2(%arg0: i32) -> (i32, i32) {
    %c0_i32 = arith.constant 0 : i32
    %c0_i32_0 = arith.constant 0 : i32
    %c0_i32_1 = arith.constant 0 : i32
    return %c0_i32, %c0_i32_0 : i32, i32
  }
  func.func @transform_3(%arg0: i32) -> (i32, i32, i32) {
    %c0_i32 = arith.constant 0 : i32
    %c0_i32_0 = arith.constant 0 : i32
    %c0_i32_1 = arith.constant 0 : i32
    return %arg0, %c0_i32, %c0_i32_0 : i32, i32, i32
  }
}

</mosaic_0001>

<llo_original>
// kernel: model_forward.1
$region0: #{model_forward.1}
  #allocation0 [shape = 'u32[]', space=smem, size = 0x4, offset = 0x4, fixed_abs, tag = 'smem constant byte address 0x4 - core index']
  #allocation1 [shape = 'u32[144,128]{1,0:T(1,128)}', space=vmem, size = 0x12000, scoped, tag = 'internal scratch']
  %s0 = inlined_call_operand.vmem [shape: bf16[8,16,16], index: 0, kind: input, shape index: {}]
  %s1 = inlined_call_operand.vmem [shape: f32[8,64,16], index: 1, kind: input, shape index: {}]
  %s2 = inlined_call_operand.vmem [shape: bf16[72,128], index: 2, kind: input, shape index: {}]
  %s3 = inlined_call_operand.vmem [shape: f32[8,16,4], index: 3, kind: output, shape index: {}]
  %s4 = sld [smem:[#allocation0]]
  $region45: #{model_forward.1} parent=0
    _
  %s6 = ssub.s32 1, %s4
  %s7 = scalar_select 0, %s6, %s4
  loop: start=0, step=1, limit=10
  $region2: #{model_forward.1} parent=0 // loop_pre_header
    _
  $region3: #{model_forward.1} parent=0 // loop_header
    %s9 = sphi 0, %s13
    %p10 = scmp.ge.s32.totalorder %s9, 10
    %s19 = sphi 0, %s21
    %s22 = sphi 0, %s19
    %s23 = sphi 0, %s22
    %s39 = sphi 0, %s23
    %s45 = sphi 0, %s47
    %s48 = sphi 0, %s45
    %s49 = sphi 0, %s48
    %s65 = sphi 0, %s49
    %s69 = sphi 0, %s69
    %s71 = sphi 0, %s69
    %s72 = sphi 0, %s71
    %s86 = sphi 0, %s72
    %s92 = sphi 0, %s94
    %s95 = sphi 0, %s92
    %s96 = sphi 0, %s95
    %s112 = sphi 0, %s96
  $region4: #{model_forward.1} parent=0 // loop_header_branch
    %12 = sbr.rel (%p10) target = $region8
  $region5: #{model_forward.1} parent=0 // loop_body
    %s14 = ssub.s32 %s9, 1
    %s15 = ssub.s32 %s9, 2
    %s16 = sadd.s32 %s9, 1
    %s17 = ssub.s32 %s9, %s16
    %p18 = scmp.eq.s32.totalorder %s17, 0
    %s20 = sadd.s32 %s19, 1
    %s21 = scalar_select %p18, %s19, %s20
    %p24 = pneg %p18
    %p25 = scmp.eq.s32.totalorder %s9, 7
    %p26 = por %p24, %p25
    %p27 = scmp.ne.s32.totalorder %s19, %s22
    %p28 = scmp.eq.s32.totalorder %s9, 0
    %p29 = por %p27, %p28
    %p30 = scmp.ne.s32.totalorder %s19, %s22
    %p31 = scmp.eq.s32.totalorder %s14, 7
    %p32 = por %p30, %p31
    %p33 = scmp.ne.s32.totalorder %s22, %s23
    %p34 = scmp.eq.s32.totalorder %s14, 0
    %p35 = por %p33, %p34
    %p36 = scmp.ne.s32.totalorder %s22, %s23
    %p37 = scmp.eq.s32.totalorder %s15, 7
    %p38 = por %p36, %p37
    %p40 = scmp.ne.s32.totalorder %s23, %s39
    %p41 = scmp.eq.s32.totalorder %s15, 0
    %p42 = por %p40, %p41
    %s43 = ssub.s32 %s9, %s16
    %p44 = scmp.eq.s32.totalorder %s43, 0
    %s46 = sadd.s32 %s45, 1
    %s47 = scalar_select %p44, %s45, %s46
    %p50 = pneg %p44
    %p51 = scmp.eq.s32.totalorder %s9, 7
    %p52 = por %p50, %p51
    %p53 = scmp.ne.s32.totalorder %s45, %s48
    %p54 = scmp.eq.s32.totalorder %s9, 0
    %p55 = por %p53, %p54
    %p56 = scmp.ne.s32.totalorder %s45, %s48
    %p57 = scmp.eq.s32.totalorder %s14, 7
    %p58 = por %p56, %p57
    %p59 = scmp.ne.s32.totalorder %s48, %s49
    %p60 = scmp.eq.s32.totalorder %s14, 0
    %p61 = por %p59, %p60
    %p62 = scmp.ne.s32.totalorder %s48, %s49
    %p63 = scmp.eq.s32.totalorder %s15, 7
    %p64 = por %p62, %p63
    %p66 = scmp.ne.s32.totalorder %s49, %s65
    %p67 = scmp.eq.s32.totalorder %s15, 0
    %p68 = por %p66, %p67
    %s70 = sadd.s32 %s69, 1
    %p73 = scmp.eq.s32.totalorder %s9, 7
    %p74 = scmp.ne.s32.totalorder %s69, %s71
    %p75 = scmp.eq.s32.totalorder %s9, 0
    %p76 = por %p74, %p75
    %p77 = scmp.ne.s32.totalorder %s69, %s71
    %p78 = scmp.eq.s32.totalorder %s14, 7
    %p79 = por %p77, %p78
    %p80 = scmp.ne.s32.totalorder %s71, %s72
    %p81 = scmp.eq.s32.totalorder %s14, 0
    %p82 = por %p80, %p81
    %p83 = scmp.ne.s32.totalorder %s71, %s72
    %p84 = scmp.eq.s32.totalorder %s15, 7
    %p85 = por %p83, %p84
    %p87 = scmp.ne.s32.totalorder %s72, %s86
    %p88 = scmp.eq.s32.totalorder %s15, 0
    %p89 = por %p87, %p88
    %s90 = ssub.s32 %s9, %s16
    %p91 = scmp.eq.s32.totalorder %s90, 0
    %s93 = sadd.s32 %s92, 1
    %s94 = scalar_select %p91, %s92, %s93
    %p97 = pneg %p91
    %p98 = scmp.eq.s32.totalorder %s9, 7
    %p99 = por %p97, %p98
    %p100 = scmp.ne.s32.totalorder %s92, %s95
    %p101 = scmp.eq.s32.totalorder %s9, 0
    %p102 = por %p100, %p101
    %p103 = scmp.ne.s32.totalorder %s92, %s95
    %p104 = scmp.eq.s32.totalorder %s14, 7
    %p105 = por %p103, %p104
    %p106 = scmp.ne.s32.totalorder %s95, %s96
    %p107 = scmp.eq.s32.totalorder %s14, 0
    %p108 = por %p106, %p107
    %p109 = scmp.ne.s32.totalorder %s95, %s96
    %p110 = scmp.eq.s32.totalorder %s15, 7
    %p111 = por %p109, %p110
    %p113 = scmp.ne.s32.totalorder %s96, %s112
    %p114 = scmp.eq.s32.totalorder %s15, 0
    %p115 = por %p113, %p114
    %p116 = scmp.le.s32.totalorder 1, %s9
    %p117 = scmp.lt.s32.totalorder %s9, 9
    %p118 = pnand %p116, %p117
    %p119 = pneg %p118
    // Predicated region
    $region9: #{model_forward.1} parent=5 // pred_check
      _
    $region10: #{model_forward.1} parent=5 // pred_check_branch
      %121 = sbr.rel (%p118) target = $region12
    $region11: #{model_forward.1} parent=5 // pred_region
      %s122 = ssub.s32 %s9, 1
      // Predicated region
      $region13: #{model_forward.1} parent=11 // pred_check
        %p123 = pneg %p82
      $region14: #{model_forward.1} parent=11 // pred_check_branch
        %125 = sbr.rel (%p123) target = $region16
      $region15: #{model_forward.1} parent=11 // pred_region
        _
      $region16: #{model_forward.1} parent=11 // pred_fallthru
        _
    $region12: #{model_forward.1} parent=5 // pred_fallthru
      _
    %p126 = scmp.lt.s32.totalorder %s9, 8
    // Predicated region
    $region17: #{model_forward.1} parent=5 // pred_check
      %p127 = pneg %p126
    $region18: #{model_forward.1} parent=5 // pred_check_branch
      %129 = sbr.rel (%p127) target = $region20
    $region19: #{model_forward.1} parent=5 // pred_region
      // Predicated region
      $region21: #{model_forward.1} parent=19 // pred_check
        %p130 = pneg %p29
      $region22: #{model_forward.1} parent=19 // pred_check_branch
        %132 = sbr.rel (%p130) target = $region24
      $region23: #{model_forward.1} parent=19 // pred_region
        %p133 = scmp.lt.s32.totalorder %s9, 7
        %s134 = scalar_select %p133, %s9, 7
        %s135 = smul.addr %s134, 2
        %s136 = smul.addr %s135, 4
        %s137 = scalar_lea.vmem %s0, %s136
      $region24: #{model_forward.1} parent=19 // pred_fallthru
        _
      // Predicated region
      $region25: #{model_forward.1} parent=19 // pred_check
        %p138 = pneg %p55
      $region26: #{model_forward.1} parent=19 // pred_check_branch
        %140 = sbr.rel (%p138) target = $region28
      $region27: #{model_forward.1} parent=19 // pred_region
        %p141 = scmp.lt.s32.totalorder %s9, 7
        %s142 = scalar_select %p141, %s9, 7
        %s143 = smul.addr %s142, 8
        %s144 = smul.addr %s143, 8
        %s145 = scalar_lea.vmem %s1, %s144
      $region28: #{model_forward.1} parent=19 // pred_fallthru
        _
    $region20: #{model_forward.1} parent=5 // pred_fallthru
      _
    %p146 = scmp.le.s32.totalorder 1, %s9
    %p147 = scmp.lt.s32.totalorder %s9, 9
    %p148 = pnand %p146, %p147
    %p149 = pneg %p148
    // Predicated region
    $region29: #{model_forward.1} parent=5 // pred_check
      _
    $region30: #{model_forward.1} parent=5 // pred_check_branch
      %151 = sbr.rel (%p148) target = $region32
    $region31: #{model_forward.1} parent=5 // pred_region
      %s152 = ssub.s32 %s9, 1
      %p153 = scmp.lt.s32.totalorder %s14, 7
      %s154 = scalar_select %p153, %s14, 7
      %s155 = smul.addr %s154, 2
      %s156 = smul.addr %s155, 4
      %s157 = scalar_lea.vmem %s0, %s156
      %p158 = pneg %p35
      %p159 = pneg %p32
      %p160 = scmp.lt.s32.totalorder %s14, 7
      %s161 = scalar_select %p160, %s14, 7
      %s162 = smul.addr %s161, 8
      %s163 = smul.addr %s162, 8
      %s164 = scalar_lea.vmem %s1, %s163
      %p165 = pneg %p61
      %p166 = pneg %p58
      %p167 = pneg %p82
      %p168 = pneg %p79
      %p169 = pneg %p108
      %p170 = pneg %p105
      %p171 = scmp.lt.s32.totalorder %s14, 7
      %s172 = scalar_select %p171, %s14, 7
      %s173 = smul.addr %s172, 2
      %s174 = smul.addr %s173, 8
      %s175 = scalar_lea.vmem %s3, %s174
      %p176 = scmp.lt.s32.totalorder %s14, 7
      %s177 = scalar_select %p176, %s14, 7
      %s178 = smul.addr %s177, 2
      %s179 = smul.addr %s178, 4
      %s180 = scalar_lea.vmem %s0, %s179
      %p181 = scmp.lt.s32.totalorder %s14, 7
      %s182 = scalar_select %p181, %s14, 7
      %s183 = smul.addr %s182, 8
      %s184 = smul.addr %s183, 8
      %s185 = scalar_lea.vmem %s1, %s184
      %p186 = scmp.lt.s32.totalorder %s14, 7
      %s187 = scalar_select %p186, %s14, 7
      %s188 = smul.addr %s187, 2
      %s189 = smul.addr %s188, 8
      %s190 = scalar_lea.vmem %s3, %s189
      %v192 = vld [vmem:[%s180] sm:$0xf]
      %v193 = vld [vmem:[%s180 + $0x4] sm:$0xf]
      %v194 = vld [vmem:[%s185] sm:$0xff]
      %v195 = vld [vmem:[%s185 + $0x8] sm:$0xff]
      %v196 = vld [vmem:[%s185 + $0x10] sm:$0xff]
      %v197 = vld [vmem:[%s185 + $0x18] sm:$0xff]
      %v198 = vld [vmem:[%s185 + $0x20] sm:$0xff]
      %v199 = vld [vmem:[%s185 + $0x28] sm:$0xff]
      %v200 = vld [vmem:[%s185 + $0x30] sm:$0xff]
      %v201 = vld [vmem:[%s185 + $0x38] sm:$0xff]
      %v202 = vld [vmem:[%s2] sm:$0xf]
      %v203 = vld [vmem:[%s2 + $0x4] sm:$0xf]
      %v206 = vunpack.c.l.b16 %v192
      %v207 = vunpack.c.l.b16 %v193
      %v208 = vpack.c.b16 %v207, %v206
      %v211 = vunpack.c.l.b16 %v202
      %v212 = vunpack.c.l.b16 %v203
      %v213 = vpack.c.b16 %v212, %v211
      %vm215 = vcmask 130048
      %v217 = vsel %vm215, %v208, 0
      %219 = vmatprep.subr.bf16.mxu0 0
      %220 = vmatpush1.bf16.msra.mxu0 %v213
      %221 = vmatprep.subr.bf16.mxu0 0
      %222 = vmatpush1.bf16.msra.mxu0 0
      %223 = vmatprep.subr.bf16.mxu0 0
      %224 = vmatpush1.bf16.msra.mxu0 0
      %225 = vmatprep.subr.bf16.mxu0 0
      %226 = vmatpush1.bf16.msra.mxu0 0
      %227 = vmatprep.subr.bf16.mxu0 0
      %228 = vmatpush1.bf16.msra.mxu0 0
      %229 = vmatprep.subr.bf16.mxu0 0
      %230 = vmatpush1.bf16.msra.mxu0 0
      %231 = vmatprep.subr.bf16.mxu0 0
      %232 = vmatpush1.bf16.msra.mxu0 0
      %233 = vmatprep.subr.bf16.mxu0 0
      %234 = vmatpush1.bf16.msra.mxu0 0
      %235 = vmatprep.subr.bf16.mxu0 0
      %236 = vmatpush1.bf16.msra.mxu0 0
      %237 = vmatprep.subr.bf16.mxu0 0
      %238 = vmatpush1.bf16.msra.mxu0 0
      %239 = vmatprep.subr.bf16.mxu0 0
      %240 = vmatpush1.bf16.msra.mxu0 0
      %241 = vmatprep.subr.bf16.mxu0 0
      %242 = vmatpush1.bf16.msra.mxu0 0
      %243 = vmatprep.subr.bf16.mxu0 0
      %244 = vmatpush1.bf16.msra.mxu0 0
      %245 = vmatprep.subr.bf16.mxu0 0
      %246 = vmatpush1.bf16.msra.mxu0 0
      %247 = vmatprep.subr.bf16.mxu0 0
      %248 = vmatpush1.bf16.msra.mxu0 0
      %249 = vmatprep.subr.bf16.mxu0 0
      %250 = vmatpush1.bf16.msra.mxu0 0
      %251 = vmatprep.mubr.bf16.mxu0 0
      %252 = vmatmul.mubr.bf16.gmra.mrb[0].mxu0 %v217
      %v253 = vpop.f32.mrb[0].mxu0
      %v254 = vadd.f32 0.0, %v253
      %v255 = vpop.f32.mrb[0].mxu0
      %v256 = vpop.f32.mrb[0].mxu0
      %v257 = vadd.f32 0.0, %v256
      %v258 = vpop.f32.mrb[0].mxu0
      %259 = vdwg.mxu0
      %261 = vset.pattern.permute.xlu0 17
      %262 = vperm.xlu0 %261, %v254
      %v263 = vpop.permute.xlu0 %262
      %266 = vset.pattern.permute.xlu0 17
      %267 = vperm.xlu0 %266, %v257
      %v268 = vpop.permute.xlu0 %267
      %270 = vxpose.xlu0.b32.start [1/16] %v263, 128
      %271 = vxpose.xlu0.b32.cont [2/16] %v268, 128
      %272 = vxpose.xlu0.b32.cont [3/16] 0.0, 128
      %273 = vxpose.xlu0.b32.cont [4/16] 0.0, 128
      %274 = vxpose.xlu0.b32.cont [5/16] 0.0, 128
      %275 = vxpose.xlu0.b32.cont [6/16] 0.0, 128
      %276 = vxpose.xlu0.b32.cont [7/16] 0.0, 128
      %277 = vxpose.xlu0.b32.cont [8/16] 0.0, 128
      %278 = vxpose.xlu0.b32.cont [9/16] 0.0, 128
      %279 = vxpose.xlu0.b32.cont [10/16] 0.0, 128
      %280 = vxpose.xlu0.b32.cont [11/16] 0.0, 128
      %281 = vxpose.xlu0.b32.cont [12/16] 0.0, 128
      %282 = vxpose.xlu0.b32.cont [13/16] 0.0, 128
      %283 = vxpose.xlu0.b32.cont [14/16] 0.0, 128
      %284 = vxpose.xlu0.b32.cont [15/16] 0.0, 128
      %285 = vxpose.xlu0.b32.end [16/16] 0.0, 128
      %v286 = vpop.trf.xlu0
      %v287 = vpop.trf.xlu0
      %v288 = vpop.trf.xlu0
      %v289 = vpop.trf.xlu0
      %v290 = vpop.trf.xlu0
      %v291 = vpop.trf.xlu0
      %v292 = vpop.trf.xlu0
      %v293 = vpop.trf.xlu0
      %v294 = vpop.trf.xlu0
      %v295 = vpop.trf.xlu0
      %v296 = vpop.trf.xlu0
      %v297 = vpop.trf.xlu0
      %v298 = vpop.trf.xlu0
      %v299 = vpop.trf.xlu0
      %v300 = vpop.trf.xlu0
      %v301 = vpop.trf.xlu0
      %302 = vset.pattern.permute.xlu0 16
      %303 = vperm.xlu0 %302, %v254
      %v304 = vpop.permute.xlu0 %303
      %306 = vset.pattern.permute.xlu0 16
      %307 = vperm.xlu0 %306, %v257
      %v308 = vpop.permute.xlu0 %307
      %v310 = vadd.f32 %v304, %v286
      %v311 = vadd.f32 %v308, %v287
      %v312 = vadd.f32 %v310, %v194
      %v313 = vadd.f32 %v311, %v195
      %vm314 = vcmp.gt.f32.partialorder %v312, 0.0
      %vm315 = vcmp.gt.f32.partialorder %v313, 0.0
      %v316 = vmul.f32 %v312, 0.01
      %v317 = vmul.f32 %v313, 0.01
      %v318 = vsel %vm314, %v312, %v316
      %v319 = vsel %vm315, %v313, %v317
      %v320 = vadd.f32 %v318, %v198
      %v321 = vadd.f32 %v319, %v199
      %v322 = vsel %vm215, %v320, -inf
      %323 = vmax.xlane.f32.xlu0 %v322
      %v324 = vpop.xlane.xlu0 %323
      %v325 = vsel %vm215, %v321, -inf
      %326 = vmax.xlane.f32.xlu0 %v325
      %v327 = vpop.xlane.xlu0 %326
      %v328 = vsub.f32 %v320, %v324
      %v329 = vsub.f32 %v321, %v327
      %v330 = vmul.f32 %v328, 1.442695
      %v331 = vpow.pop %v330
      %v332 = vmul.f32 %v329, 1.442695
      %v333 = vpow.pop %v332
      %v334 = vsel %vm215, %v331, 0.0
      %335 = vadd.xlane.f32.xlu0 %v334
      %v336 = vpop.xlane.xlu0 %335
      %v337 = vsel %vm215, %v333, 0.0
      %338 = vadd.xlane.f32.xlu0 %v337
      %v339 = vpop.xlane.xlu0 %338
      %v340 = vrcp.pop %v336
      %v341 = vrcp.pop %v339
      %v342 = vmul.f32 %v331, %v340
      %v343 = vmul.f32 %v333, %v341
      %v344 = vpack.c.bf16 %v343, %v342
      %v345 = vpack.c.bf16 %v257, %v254
      %v347 = vsel %vm215, %v344, 0
      %349 = vmatprep.subr.bf16.mxu0 0
      %350 = vmatpush1.bf16.msra.mxu0 %v345
      %351 = vmatprep.subr.bf16.mxu0 0
      %352 = vmatpush1.bf16.msra.mxu0 0
      %353 = vmatprep.subr.bf16.mxu0 0
      %354 = vmatpush1.bf16.msra.mxu0 0
      %355 = vmatprep.subr.bf16.mxu0 0
      %356 = vmatpush1.bf16.msra.mxu0 0
      %357 = vmatprep.subr.bf16.mxu0 0
      %358 = vmatpush1.bf16.msra.mxu0 0
      %359 = vmatprep.subr.bf16.mxu0 0
      %360 = vmatpush1.bf16.msra.mxu0 0
      %361 = vmatprep.subr.bf16.mxu0 0
      %362 = vmatpush1.bf16.msra.mxu0 0
      %363 = vmatprep.subr.bf16.mxu0 0
      %364 = vmatpush1.bf16.msra.mxu0 0
      %365 = vmatprep.subr.bf16.mxu0 0
      %366 = vmatpush1.bf16.msra.mxu0 0
      %367 = vmatprep.subr.bf16.mxu0 0
      %368 = vmatpush1.bf16.msra.mxu0 0
      %369 = vmatprep.subr.bf16.mxu0 0
      %370 = vmatpush1.bf16.msra.mxu0 0
      %371 = vmatprep.subr.bf16.mxu0 0
      %372 = vmatpush1.bf16.msra.mxu0 0
      %373 = vmatprep.subr.bf16.mxu0 0
      %374 = vmatpush1.bf16.msra.mxu0 0
      %375 = vmatprep.subr.bf16.mxu0 0
      %376 = vmatpush1.bf16.msra.mxu0 0
      %377 = vmatprep.subr.bf16.mxu0 0
      %378 = vmatpush1.bf16.msra.mxu0 0
      %379 = vmatprep.subr.bf16.mxu0 0
      %380 = vmatpush1.bf16.msra.mxu0 0
      %381 = vmatprep.mubr.bf16.mxu0 0
      %382 = vmatmul.mubr.bf16.gmra.mrb[0].mxu0 %v347
      %v383 = vpop.f32.mrb[0].mxu0
      %v384 = vadd.f32 0.0, %v383
      %v385 = vpop.f32.mrb[0].mxu0
      %v386 = vpop.f32.mrb[0].mxu0
      %v387 = vadd.f32 0.0, %v386
      %v388 = vpop.f32.mrb[0].mxu0
      %389 = vdwg.mxu0
      %v390 = vld [vmem:[%s2 + $0x8] sm:$0xf]
      %v391 = vld [vmem:[%s2 + $0xc] sm:$0xf]
      %v392 = vpack.c.bf16 %v387, %v384
      %v395 = vunpack.c.l.b16 %v390
      %v396 = vunpack.c.l.b16 %v391
      %v397 = vpack.c.b16 %v396, %v395
      %v400 = vsel %vm215, %v392, 0
      %402 = vmatprep.subr.bf16.mxu0 0
      %403 = vmatpush1.bf16.msra.mxu0 %v397
      %404 = vmatprep.subr.bf16.mxu0 0
      %405 = vmatpush1.bf16.msra.mxu0 0
      %406 = vmatprep.subr.bf16.mxu0 0
      %407 = vmatpush1.bf16.msra.mxu0 0
      %408 = vmatprep.subr.bf16.mxu0 0
      %409 = vmatpush1.bf16.msra.mxu0 0
      %410 = vmatprep.subr.bf16.mxu0 0
      %411 = vmatpush1.bf16.msra.mxu0 0
      %412 = vmatprep.subr.bf16.mxu0 0
      %413 = vmatpush1.bf16.msra.mxu0 0
      %414 = vmatprep.subr.bf16.mxu0 0
      %415 = vmatpush1.bf16.msra.mxu0 0
      %416 = vmatprep.subr.bf16.mxu0 0
      %417 = vmatpush1.bf16.msra.mxu0 0
      %418 = vmatprep.subr.bf16.mxu0 0
      %419 = vmatpush1.bf16.msra.mxu0 0
      %420 = vmatprep.subr.bf16.mxu0 0
      %421 = vmatpush1.bf16.msra.mxu0 0
      %422 = vmatprep.subr.bf16.mxu0 0
      %423 = vmatpush1.bf16.msra.mxu0 0
      %424 = vmatprep.subr.bf16.mxu0 0
      %425 = vmatpush1.bf16.msra.mxu0 0
      %426 = vmatprep.subr.bf16.mxu0 0
      %427 = vmatpush1.bf16.msra.mxu0 0
      %428 = vmatprep.subr.bf16.mxu0 0
      %429 = vmatpush1.bf16.msra.mxu0 0
      %430 = vmatprep.subr.bf16.mxu0 0
      %431 = vmatpush1.bf16.msra.mxu0 0
      %432 = vmatprep.subr.bf16.mxu0 0
      %433 = vmatpush1.bf16.msra.mxu0 0
      %434 = vmatprep.mubr.bf16.mxu0 0
      %435 = vmatmul.mubr.bf16.gmra.mrb[0].mxu0 %v400
      %v436 = vpop.f32.mrb[0].mxu0
      %v437 = vadd.f32 0.0, %v436
      %v438 = vpop.f32.mrb[0].mxu0
      %v439 = vpop.f32.mrb[0].mxu0
      %v440 = vadd.f32 0.0, %v439
      %v441 = vpop.f32.mrb[0].mxu0
      %442 = vdwg.mxu0
      %vm443 = vcmp.gt.f32.partialorder %v437, 0.0
      %vm444 = vcmp.gt.f32.partialorder %v440, 0.0
      %v445 = vmul.f32 %v437, 0.01
      %v446 = vmul.f32 %v440, 0.01
      %v447 = vsel %vm443, %v437, %v445
      %v448 = vsel %vm444, %v440, %v446
      %v449 = vpack.c.bf16 %v448, %v447
      %v450 = vld [vmem:[%s2 + $0x10] sm:$0xf]
      %v451 = vld [vmem:[%s2 + $0x14] sm:$0xf]
      %v454 = vunpack.c.l.b16 %v450
      %v455 = vunpack.c.l.b16 %v451
      %v456 = vpack.c.b16 %v455, %v454
      %v459 = vsel %vm215, %v449, 0
      %461 = vmatprep.subr.bf16.mxu0 0
      %462 = vmatpush1.bf16.msra.mxu0 %v456
      %463 = vmatprep.subr.bf16.mxu0 0
      %464 = vmatpush1.bf16.msra.mxu0 0
      %465 = vmatprep.subr.bf16.mxu0 0
      %466 = vmatpush1.bf16.msra.mxu0 0
      %467 = vmatprep.subr.bf16.mxu0 0
      %468 = vmatpush1.bf16.msra.mxu0 0
      %469 = vmatprep.subr.bf16.mxu0 0
      %470 = vmatpush1.bf16.msra.mxu0 0
      %471 = vmatprep.subr.bf16.mxu0 0
      %472 = vmatpush1.bf16.msra.mxu0 0
      %473 = vmatprep.subr.bf16.mxu0 0
      %474 = vmatpush1.bf16.msra.mxu0 0
      %475 = vmatprep.subr.bf16.mxu0 0
      %476 = vmatpush1.bf16.msra.mxu0 0
      %477 = vmatprep.subr.bf16.mxu0 0
      %478 = vmatpush1.bf16.msra.mxu0 0
      %479 = vmatprep.subr.bf16.mxu0 0
      %480 = vmatpush1.bf16.msra.mxu0 0
      %481 = vmatprep.subr.bf16.mxu0 0
      %482 = vmatpush1.bf16.msra.mxu0 0
      %483 = vmatprep.subr.bf16.mxu0 0
      %484 = vmatpush1.bf16.msra.mxu0 0
      %485 = vmatprep.subr.bf16.mxu0 0
      %486 = vmatpush1.bf16.msra.mxu0 0
      %487 = vmatprep.subr.bf16.mxu0 0
      %488 = vmatpush1.bf16.msra.mxu0 0
      %489 = vmatprep.subr.bf16.mxu0 0
      %490 = vmatpush1.bf16.msra.mxu0 0
      %491 = vmatprep.subr.bf16.mxu0 0
      %492 = vmatpush1.bf16.msra.mxu0 0
      %493 = vmatprep.mubr.bf16.mxu0 0
      %494 = vmatmul.mubr.bf16.gmra.mrb[0].mxu0 %v459
      %v495 = vpop.f32.mrb[0].mxu0
      %v496 = vadd.f32 0.0, %v495
      %v497 = vpop.f32.mrb[0].mxu0
      %v498 = vpop.f32.mrb[0].mxu0
      %v499 = vadd.f32 0.0, %v498
      %v500 = vpop.f32.mrb[0].mxu0
      %501 = vdwg.mxu0
      %503 = vset.pattern.permute.xlu0 17
      %504 = vperm.xlu0 %503, %v496
      %v505 = vpop.permute.xlu0 %504
      %508 = vset.pattern.permute.xlu0 17
      %509 = vperm.xlu0 %508, %v499
      %v510 = vpop.permute.xlu0 %509
      %512 = vxpose.xlu0.b32.start [1/16] %v505, 128
      %513 = vxpose.xlu0.b32.cont [2/16] %v510, 128
      %514 = vxpose.xlu0.b32.cont [3/16] 0.0, 128
      %515 = vxpose.xlu0.b32.cont [4/16] 0.0, 128
      %516 = vxpose.xlu0.b32.cont [5/16] 0.0, 128
      %517 = vxpose.xlu0.b32.cont [6/16] 0.0, 128
      %518 = vxpose.xlu0.b32.cont [7/16] 0.0, 128
      %519 = vxpose.xlu0.b32.cont [8/16] 0.0, 128
      %520 = vxpose.xlu0.b32.cont [9/16] 0.0, 128
      %521 = vxpose.xlu0.b32.cont [10/16] 0.0, 128
      %522 = vxpose.xlu0.b32.cont [11/16] 0.0, 128
      %523 = vxpose.xlu0.b32.cont [12/16] 0.0, 128
      %524 = vxpose.xlu0.b32.cont [13/16] 0.0, 128
      %525 = vxpose.xlu0.b32.cont [14/16] 0.0, 128
      %526 = vxpose.xlu0.b32.cont [15/16] 0.0, 128
      %527 = vxpose.xlu0.b32.end [16/16] 0.0, 128
      %v528 = vpop.trf.xlu0
      %v529 = vpop.trf.xlu0
      %v530 = vpop.trf.xlu0
      %v531 = vpop.trf.xlu0
      %v532 = vpop.trf.xlu0
      %v533 = vpop.trf.xlu0
      %v534 = vpop.trf.xlu0
      %v535 = vpop.trf.xlu0
      %v536 = vpop.trf.xlu0
      %v537 = vpop.trf.xlu0
      %v538 = vpop.trf.xlu0
      %v539 = vpop.trf.xlu0
      %v540 = vpop.trf.xlu0
      %v541 = vpop.trf.xlu0
      %v542 = vpop.trf.xlu0
      %v543 = vpop.trf.xlu0
      %544 = vset.pattern.permute.xlu0 16
      %545 = vperm.xlu0 %544, %v496
      %v546 = vpop.permute.xlu0 %545
      %548 = vset.pattern.permute.xlu0 16
      %549 = vperm.xlu0 %548, %v499
      %v550 = vpop.permute.xlu0 %549
      %v552 = vadd.f32 %v546, %v528
      %v553 = vadd.f32 %v550, %v529
      %v554 = vadd.f32 %v552, %v196
      %v555 = vadd.f32 %v553, %v197
      %vm556 = vcmp.gt.f32.partialorder %v554, 0.0
      %vm557 = vcmp.gt.f32.partialorder %v555, 0.0
      %v558 = vmul.f32 %v554, 0.01
      %v559 = vmul.f32 %v555, 0.01
      %v560 = vsel %vm556, %v554, %v558
      %v561 = vsel %vm557, %v555, %v559
      %v562 = vadd.f32 %v560, %v198
      %v563 = vadd.f32 %v561, %v199
      %v564 = vsel %vm215, %v562, -inf
      %565 = vmax.xlane.f32.xlu0 %v564
      %v566 = vpop.xlane.xlu0 %565
      %v567 = vsel %vm215, %v563, -inf
      %568 = vmax.xlane.f32.xlu0 %v567
      %v569 = vpop.xlane.xlu0 %568
      %v570 = vsub.f32 %v562, %v566
      %v571 = vsub.f32 %v563, %v569
      %v572 = vmul.f32 %v570, 1.442695
      %v573 = vpow.pop %v572
      %v574 = vmul.f32 %v571, 1.442695
      %v575 = vpow.pop %v574
      %v576 = vsel %vm215, %v573, 0.0
      %577 = vadd.xlane.f32.xlu0 %v576
      %v578 = vpop.xlane.xlu0 %577
      %v579 = vsel %vm215, %v575, 0.0
      %580 = vadd.xlane.f32.xlu0 %v579
      %v581 = vpop.xlane.xlu0 %580
      %v582 = vrcp.pop %v578
      %v583 = vrcp.pop %v581
      %v584 = vmul.f32 %v573, %v582
      %v585 = vmul.f32 %v575, %v583
      %v586 = vpack.c.bf16 %v585, %v584
      %v587 = vpack.c.bf16 %v499, %v496
      %v589 = vsel %vm215, %v586, 0
      %591 = vmatprep.subr.bf16.mxu0 0
      %592 = vmatpush1.bf16.msra.mxu0 %v587
      %593 = vmatprep.subr.bf16.mxu0 0
      %594 = vmatpush1.bf16.msra.mxu0 0
      %595 = vmatprep.subr.bf16.mxu0 0
      %596 = vmatpush1.bf16.msra.mxu0 0
      %597 = vmatprep.subr.bf16.mxu0 0
      %598 = vmatpush1.bf16.msra.mxu0 0
      %599 = vmatprep.subr.bf16.mxu0 0
      %600 = vmatpush1.bf16.msra.mxu0 0
      %601 = vmatprep.subr.bf16.mxu0 0
      %602 = vmatpush1.bf16.msra.mxu0 0
      %603 = vmatprep.subr.bf16.mxu0 0
      %604 = vmatpush1.bf16.msra.mxu0 0
      %605 = vmatprep.subr.bf16.mxu0 0
      %606 = vmatpush1.bf16.msra.mxu0 0
      %607 = vmatprep.subr.bf16.mxu0 0
      %608 = vmatpush1.bf16.msra.mxu0 0
      %609 = vmatprep.subr.bf16.mxu0 0
      %610 = vmatpush1.bf16.msra.mxu0 0
      %611 = vmatprep.subr.bf16.mxu0 0
      %612 = vmatpush1.bf16.msra.mxu0 0
      %613 = vmatprep.subr.bf16.mxu0 0
      %614 = vmatpush1.bf16.msra.mxu0 0
      %615 = vmatprep.subr.bf16.mxu0 0
      %616 = vmatpush1.bf16.msra.mxu0 0
      %617 = vmatprep.subr.bf16.mxu0 0
      %618 = vmatpush1.bf16.msra.mxu0 0
      %619 = vmatprep.subr.bf16.mxu0 0
      %620 = vmatpush1.bf16.msra.mxu0 0
      %621 = vmatprep.subr.bf16.mxu0 0
      %622 = vmatpush1.bf16.msra.mxu0 0
      %623 = vmatprep.mubr.bf16.mxu0 0
      %624 = vmatmul.mubr.bf16.gmra.mrb[0].mxu0 %v589
      %v625 = vpop.f32.mrb[0].mxu0
      %v626 = vadd.f32 0.0, %v625
      %v627 = vpop.f32.mrb[0].mxu0
      %v628 = vpop.f32.mrb[0].mxu0
      %v629 = vadd.f32 0.0, %v628
      %v630 = vpop.f32.mrb[0].mxu0
      %631 = vdwg.mxu0
      %v632 = vpack.c.bf16 %v201, %v200
      %v633 = vpack.c.bf16 %v629, %v626
      %v635 = vsel %vm215, %v632, 0
      %637 = vmatprep.subr.bf16.mxu0 0
      %638 = vmatpush1.bf16.msra.mxu0 %v633
      %639 = vmatprep.subr.bf16.mxu0 0
      %640 = vmatpush1.bf16.msra.mxu0 0
      %641 = vmatprep.subr.bf16.mxu0 0
      %642 = vmatpush1.bf16.msra.mxu0 0
      %643 = vmatprep.subr.bf16.mxu0 0
      %644 = vmatpush1.bf16.msra.mxu0 0
      %645 = vmatprep.subr.bf16.mxu0 0
      %646 = vmatpush1.bf16.msra.mxu0 0
      %647 = vmatprep.subr.bf16.mxu0 0
      %648 = vmatpush1.bf16.msra.mxu0 0
      %649 = vmatprep.subr.bf16.mxu0 0
      %650 = vmatpush1.bf16.msra.mxu0 0
      %651 = vmatprep.subr.bf16.mxu0 0
      %652 = vmatpush1.bf16.msra.mxu0 0
      %653 = vmatprep.subr.bf16.mxu0 0
      %654 = vmatpush1.bf16.msra.mxu0 0
      %655 = vmatprep.subr.bf16.mxu0 0
      %656 = vmatpush1.bf16.msra.mxu0 0
      %657 = vmatprep.subr.bf16.mxu0 0
      %658 = vmatpush1.bf16.msra.mxu0 0
      %659 = vmatprep.subr.bf16.mxu0 0
      %660 = vmatpush1.bf16.msra.mxu0 0
      %661 = vmatprep.subr.bf16.mxu0 0
      %662 = vmatpush1.bf16.msra.mxu0 0
      %663 = vmatprep.subr.bf16.mxu0 0
      %664 = vmatpush1.bf16.msra.mxu0 0
      %665 = vmatprep.subr.bf16.mxu0 0
      %666 = vmatpush1.bf16.msra.mxu0 0
      %667 = vmatprep.subr.bf16.mxu0 0
      %668 = vmatpush1.bf16.msra.mxu0 0
      %669 = vmatprep.mubr.bf16.mxu0 0
      %670 = vmatmul.mubr.bf16.gmra.mrb[0].mxu0 %v635
      %v671 = vpop.f32.mrb[0].mxu0
      %v672 = vadd.f32 0.0, %v671
      %v673 = vpop.f32.mrb[0].mxu0
      %v674 = vpop.f32.mrb[0].mxu0
      %v675 = vadd.f32 0.0, %v674
      %v676 = vpop.f32.mrb[0].mxu0
      %677 = vdwg.mxu0
      %v678 = vld [vmem:[%s2 + $0x18] sm:$0xf]
      %v679 = vld [vmem:[%s2 + $0x1c] sm:$0xf]
      %v680 = vpack.c.bf16 %v675, %v672
      %v681 = vld [vmem:[%s2 + $0x20] sm:$0x1]
      %v682 = vunpack.c.l.bf16 %v681
      %v683 = vlaneseq
      %v684 = vshrl.u32 %v683, 7
      %v685 = vsub.s32 0, %v684
      %v686 = vrot.slane %v682, %v685
      %v689 = vunpack.c.l.b16 %v678
      %v690 = vunpack.c.l.b16 %v679
      %v691 = vpack.c.b16 %v690, %v689
      %v694 = vsel %vm215, %v680, 0
      %696 = vmatprep.subr.bf16.mxu0 0
      %697 = vmatpush1.bf16.msra.mxu0 %v691
      %698 = vmatprep.subr.bf16.mxu0 0
      %699 = vmatpush1.bf16.msra.mxu0 0
      %700 = vmatprep.subr.bf16.mxu0 0
      %701 = vmatpush1.bf16.msra.mxu0 0
      %702 = vmatprep.subr.bf16.mxu0 0
      %703 = vmatpush1.bf16.msra.mxu0 0
      %704 = vmatprep.subr.bf16.mxu0 0
      %705 = vmatpush1.bf16.msra.mxu0 0
      %706 = vmatprep.subr.bf16.mxu0 0
      %707 = vmatpush1.bf16.msra.mxu0 0
      %708 = vmatprep.subr.bf16.mxu0 0
      %709 = vmatpush1.bf16.msra.mxu0 0
      %710 = vmatprep.subr.bf16.mxu0 0
      %711 = vmatpush1.bf16.msra.mxu0 0
      %712 = vmatprep.subr.bf16.mxu0 0
      %713 = vmatpush1.bf16.msra.mxu0 0
      %714 = vmatprep.subr.bf16.mxu0 0
      %715 = vmatpush1.bf16.msra.mxu0 0
      %716 = vmatprep.subr.bf16.mxu0 0
      %717 = vmatpush1.bf16.msra.mxu0 0
      %718 = vmatprep.subr.bf16.mxu0 0
      %719 = vmatpush1.bf16.msra.mxu0 0
      %720 = vmatprep.subr.bf16.mxu0 0
      %721 = vmatpush1.bf16.msra.mxu0 0
      %722 = vmatprep.subr.bf16.mxu0 0
      %723 = vmatpush1.bf16.msra.mxu0 0
      %724 = vmatprep.subr.bf16.mxu0 0
      %725 = vmatpush1.bf16.msra.mxu0 0
      %726 = vmatprep.subr.bf16.mxu0 0
      %727 = vmatpush1.bf16.msra.mxu0 0
      %728 = vmatprep.mubr.bf16.mxu0 0
      %729 = vmatmul.mubr.bf16.gmra.mrb[0].mxu0 %v694
      %v730 = vpop.f32.mrb[0].mxu0
      %v731 = vadd.f32 %v686, %v730
      %v732 = vpop.f32.mrb[0].mxu0
      %v733 = vpop.f32.mrb[0].mxu0
      %v734 = vadd.f32 %v686, %v733
      %v735 = vpop.f32.mrb[0].mxu0
      %736 = vdwg.mxu0
      %vm737 = vcmask 31744
      %738 = vst.msk [vmem:[%s190] sm:$0xff] %vm737, %v731
      %739 = vst.msk [vmem:[%s190 + $0x8] sm:$0xff] %vm737, %v734
      %p740 = scmp.lt.s32.totalorder %s14, 7
      %s741 = scalar_select %p740, %s14, 7
      %s742 = smul.addr %s741, 2
      %s743 = smul.addr %s742, 8
      %s744 = scalar_lea.vmem %s3, %s743
      // Predicated region
      $region33: #{model_forward.1} parent=31 // pred_check
        %p745 = pneg %p105
      $region34: #{model_forward.1} parent=31 // pred_check_branch
        %747 = sbr.rel (%p745) target = $region36
      $region35: #{model_forward.1} parent=31 // pred_region
        _
      $region36: #{model_forward.1} parent=31 // pred_fallthru
        _
    $region32: #{model_forward.1} parent=5 // pred_fallthru
      _
    %p748 = scmp.le.s32.totalorder 2, %s9
    // Predicated region
    $region37: #{model_forward.1} parent=5 // pred_check
      %p749 = pneg %p748
    $region38: #{model_forward.1} parent=5 // pred_check_branch
      %751 = sbr.rel (%p749) target = $region40
    $region39: #{model_forward.1} parent=5 // pred_region
      %s752 = ssub.s32 %s9, 2
      // Predicated region
      $region41: #{model_forward.1} parent=39 // pred_check
        %p753 = pneg %p111
      $region42: #{model_forward.1} parent=39 // pred_check_branch
        %755 = sbr.rel (%p753) target = $region44
      $region43: #{model_forward.1} parent=39 // pred_region
        %p756 = scmp.lt.s32.totalorder %s15, 7
        %s757 = scalar_select %p756, %s15, 7
        %s758 = smul.addr %s757, 2
        %s759 = smul.addr %s758, 8
        %s760 = scalar_lea.vmem %s3, %s759
      $region44: #{model_forward.1} parent=39 // pred_fallthru
        _
    $region40: #{model_forward.1} parent=5 // pred_fallthru
      _
  $region6: #{model_forward.1} parent=0 // loop_footer
    %s13 = sadd.s32 1, %s9
  $region7: #{model_forward.1} parent=0 // loop_footer_branch
    %8 = sbr.rel target = $region3
  $region8: #{model_forward.1} parent=0 // loop_exit
    _

</llo_original>
